<compile_context>
chip_gen: v6e
topology: v6e:2x2x1
jax: 0.10.0
libtpu: 0.0.40
codegen_flags: <defaults>
</compile_context>

<pallas_src>
import functools

import jax
import jax.numpy as jnp
from jax.experimental import pallas as pl
from jax.experimental.pallas import tpu as pltpu


def _channel_shuffle_kernel(x_ref, o_ref, *, groups, cpg):
    # x_ref / o_ref: (Bt, C, HWp) blocks resident in VMEM.
    # out channel c_out = i*groups + j  <-  in channel c_in = j*cpg + i
    C = groups * cpg
    for c_out in range(C):
        i, j = c_out // groups, c_out % groups
        c_in = j * cpg + i
        o_ref[:, c_out:c_out + 1, :] = x_ref[:, c_in:c_in + 1, :]


def channel_shuffle(x, groups=4):
    """Pallas ChannelShuffle.  x: (B, C, H, W) with C % groups == 0."""
    B, C, H, W = x.shape
    assert C % groups == 0, (C, groups)
    cpg = C // groups
    HW = H * W

    x_flat = x.reshape(B, C, HW)

    # Lane-dense spatial axis: pad H*W up to a multiple of 128 if needed.
    # Padding lanes are just extra columns; the shuffle only permutes channel
    # rows, so we slice them off afterwards (no-op for the test shape).
    HWp = ((HW + 127) // 128) * 128
    if HWp != HW:
        x_flat = jnp.pad(x_flat, ((0, 0), (0, 0), (0, HWp - HW)))

    # Batch-block size: as large as VMEM comfortably allows (2 in + 2 out
    # double-buffered tiles under an 8 MiB budget -> fits default scoped VMEM
    # on v5e/v6e/v7x), but keep >= 2 grid steps so both v7x TensorCores work.
    bytes_per_img = C * HWp * jnp.dtype(x.dtype).itemsize
    vmem_budget = 8 * 1024 * 1024
    bt = max(1, vmem_budget // (4 * bytes_per_img))
    if B >= 2:
        bt = min(bt, B // 2)
    bt = max(1, int(bt))
    while B % bt != 0:          # block size must divide B exactly
        bt -= 1

    kernel = functools.partial(_channel_shuffle_kernel, groups=groups, cpg=cpg)
    out_flat = pl.pallas_call(
        kernel,
        out_shape=jax.ShapeDtypeStruct((B, C, HWp), x.dtype),
        grid_spec=pltpu.PrefetchScalarGridSpec(
            num_scalar_prefetch=0,
            grid=(B // bt,),
            in_specs=[pl.BlockSpec((bt, C, HWp), lambda b: (b, 0, 0))],
            out_specs=pl.BlockSpec((bt, C, HWp), lambda b: (b, 0, 0)),
        ),
        compiler_params=pltpu.CompilerParams(
            dimension_semantics=("parallel",)),
    )(x_flat)

    if HWp != HW:
        out_flat = out_flat[:, :, :HW]
    return out_flat.reshape(B, C, H, W)


def channel_shuffle_ref(x, groups):
    """Pure-JAX reference mirroring the PyTorch module."""
    B, C, H, W = x.shape
    cpg = C // groups
    y = x.reshape(B, groups, cpg, H, W)
    y = jnp.transpose(y, (0, 2, 1, 3, 4))
    return y.reshape(B, C, H, W)


if __name__ == "__main__":
    # groups=4 is the module default; C=16 -> cpg=4 gives a non-trivial shuffle.
    B, C, H, W = 2, 16, 16, 16
    groups = 4

    x = jax.random.normal(jax.random.PRNGKey(0), (B, C, H, W), dtype=jnp.float32)

    out = jax.block_until_ready(channel_shuffle(x, groups))
    ref = jax.block_until_ready(channel_shuffle_ref(x, groups))

    assert out.shape == (B, C, H, W)
    assert bool(jnp.array_equal(out, ref)), float(jnp.max(jnp.abs(out - ref)))
    print("KERNEL_OK")
</pallas_src>

<mosaic_0001>
module attributes {stable_mosaic.version = 11 : i64} {
  func.func @_channel_shuffle_kernel(%arg0: i32, %arg1: memref<1x16x256xf32, #tpu.memory_space<vmem>>, %arg2: memref<1x16x256xf32, #tpu.memory_space<vmem>>) attributes {dimension_semantics = [#tpu.dimension_semantics<parallel>], iteration_bounds = array<i64: 2>, scalar_prefetch = 0 : i64, scratch_operands = 0 : i64, tpu.core_type = #tpu.core_type<tc>, window_params = [{transform_indices = @transform_0, window_bounds = array<i64: 1, 16, 256>}, {transform_indices = @transform_1, window_bounds = array<i64: 1, 16, 256>}]} {
    %c0 = arith.constant 0 : index
    %c0_0 = arith.constant 0 : index
    %c0_1 = arith.constant 0 : index
    %0 = vector.load %arg1[%c0, %c0_0, %c0_1] : memref<1x16x256xf32, #tpu.memory_space<vmem>>, vector<1x1x256xf32>
    %c0_2 = arith.constant 0 : index
    %c0_3 = arith.constant 0 : index
    %c0_4 = arith.constant 0 : index
    %1 = vector.load %arg2[%c0_2, %c0_3, %c0_4] : memref<1x16x256xf32, #tpu.memory_space<vmem>>, vector<1x1x256xf32>
    tpu.vector_store %arg2[%c0_2, %c0_3, %c0_4], %0 {strides = array<i32>} : memref<1x16x256xf32, #tpu.memory_space<vmem>>, vector<1x1x256xf32>,
    %c0_5 = arith.constant 0 : index
    %c4 = arith.constant 4 : index
    %c0_6 = arith.constant 0 : index
    %2 = vector.load %arg1[%c0_5, %c4, %c0_6] : memref<1x16x256xf32, #tpu.memory_space<vmem>>, vector<1x1x256xf32>
    %c0_7 = arith.constant 0 : index
    %c1 = arith.constant 1 : index
    %c0_8 = arith.constant 0 : index
    %3 = vector.load %arg2[%c0_7, %c1, %c0_8] : memref<1x16x256xf32, #tpu.memory_space<vmem>>, vector<1x1x256xf32>
    tpu.vector_store %arg2[%c0_7, %c1, %c0_8], %2 {strides = array<i32>} : memref<1x16x256xf32, #tpu.memory_space<vmem>>, vector<1x1x256xf32>,
    %c0_9 = arith.constant 0 : index
    %c8 = arith.constant 8 : index
    %c0_10 = arith.constant 0 : index
    %4 = vector.load %arg1[%c0_9, %c8, %c0_10] : memref<1x16x256xf32, #tpu.memory_space<vmem>>, vector<1x1x256xf32>
    %c0_11 = arith.constant 0 : index
    %c2 = arith.constant 2 : index
    %c0_12 = arith.constant 0 : index
    %5 = vector.load %arg2[%c0_11, %c2, %c0_12] : memref<1x16x256xf32, #tpu.memory_space<vmem>>, vector<1x1x256xf32>
    tpu.vector_store %arg2[%c0_11, %c2, %c0_12], %4 {strides = array<i32>} : memref<1x16x256xf32, #tpu.memory_space<vmem>>, vector<1x1x256xf32>,
    %c0_13 = arith.constant 0 : index
    %c12 = arith.constant 12 : index
    %c0_14 = arith.constant 0 : index
    %6 = vector.load %arg1[%c0_13, %c12, %c0_14] : memref<1x16x256xf32, #tpu.memory_space<vmem>>, vector<1x1x256xf32>
    %c0_15 = arith.constant 0 : index
    %c3 = arith.constant 3 : index
    %c0_16 = arith.constant 0 : index
    %7 = vector.load %arg2[%c0_15, %c3, %c0_16] : memref<1x16x256xf32, #tpu.memory_space<vmem>>, vector<1x1x256xf32>
    tpu.vector_store %arg2[%c0_15, %c3, %c0_16], %6 {strides = array<i32>} : memref<1x16x256xf32, #tpu.memory_space<vmem>>, vector<1x1x256xf32>,
    %c0_17 = arith.constant 0 : index
    %c1_18 = arith.constant 1 : index
    %c0_19 = arith.constant 0 : index
    %8 = vector.load %arg1[%c0_17, %c1_18, %c0_19] : memref<1x16x256xf32, #tpu.memory_space<vmem>>, vector<1x1x256xf32>
    %c0_20 = arith.constant 0 : index
    %c4_21 = arith.constant 4 : index
    %c0_22 = arith.constant 0 : index
    %9 = vector.load %arg2[%c0_20, %c4_21, %c0_22] : memref<1x16x256xf32, #tpu.memory_space<vmem>>, vector<1x1x256xf32>
    tpu.vector_store %arg2[%c0_20, %c4_21, %c0_22], %8 {strides = array<i32>} : memref<1x16x256xf32, #tpu.memory_space<vmem>>, vector<1x1x256xf32>,
    %c0_23 = arith.constant 0 : index
    %c5 = arith.constant 5 : index
    %c0_24 = arith.constant 0 : index
    %10 = vector.load %arg1[%c0_23, %c5, %c0_24] : memref<1x16x256xf32, #tpu.memory_space<vmem>>, vector<1x1x256xf32>
    %c0_25 = arith.constant 0 : index
    %c5_26 = arith.constant 5 : index
    %c0_27 = arith.constant 0 : index
    %11 = vector.load %arg2[%c0_25, %c5_26, %c0_27] : memref<1x16x256xf32, #tpu.memory_space<vmem>>, vector<1x1x256xf32>
    tpu.vector_store %arg2[%c0_25, %c5_26, %c0_27], %10 {strides = array<i32>} : memref<1x16x256xf32, #tpu.memory_space<vmem>>, vector<1x1x256xf32>,
    %c0_28 = arith.constant 0 : index
    %c9 = arith.constant 9 : index
    %c0_29 = arith.constant 0 : index
    %12 = vector.load %arg1[%c0_28, %c9, %c0_29] : memref<1x16x256xf32, #tpu.memory_space<vmem>>, vector<1x1x256xf32>
    %c0_30 = arith.constant 0 : index
    %c6 = arith.constant 6 : index
    %c0_31 = arith.constant 0 : index
    %13 = vector.load %arg2[%c0_30, %c6, %c0_31] : memref<1x16x256xf32, #tpu.memory_space<vmem>>, vector<1x1x256xf32>
    tpu.vector_store %arg2[%c0_30, %c6, %c0_31], %12 {strides = array<i32>} : memref<1x16x256xf32, #tpu.memory_space<vmem>>, vector<1x1x256xf32>,
    %c0_32 = arith.constant 0 : index
    %c13 = arith.constant 13 : index
    %c0_33 = arith.constant 0 : index
    %14 = vector.load %arg1[%c0_32, %c13, %c0_33] : memref<1x16x256xf32, #tpu.memory_space<vmem>>, vector<1x1x256xf32>
    %c0_34 = arith.constant 0 : index
    %c7 = arith.constant 7 : index
    %c0_35 = arith.constant 0 : index
    %15 = vector.load %arg2[%c0_34, %c7, %c0_35] : memref<1x16x256xf32, #tpu.memory_space<vmem>>, vector<1x1x256xf32>
    tpu.vector_store %arg2[%c0_34, %c7, %c0_35], %14 {strides = array<i32>} : memref<1x16x256xf32, #tpu.memory_space<vmem>>, vector<1x1x256xf32>,
    %c0_36 = arith.constant 0 : index
    %c2_37 = arith.constant 2 : index
    %c0_38 = arith.constant 0 : index
    %16 = vector.load %arg1[%c0_36, %c2_37, %c0_38] : memref<1x16x256xf32, #tpu.memory_space<vmem>>, vector<1x1x256xf32>
    %c0_39 = arith.constant 0 : index
    %c8_40 = arith.constant 8 : index
    %c0_41 = arith.constant 0 : index
    %17 = vector.load %arg2[%c0_39, %c8_40, %c0_41] : memref<1x16x256xf32, #tpu.memory_space<vmem>>, vector<1x1x256xf32>
    tpu.vector_store %arg2[%c0_39, %c8_40, %c0_41], %16 {strides = array<i32>} : memref<1x16x256xf32, #tpu.memory_space<vmem>>, vector<1x1x256xf32>,
    %c0_42 = arith.constant 0 : index
    %c6_43 = arith.constant 6 : index
    %c0_44 = arith.constant 0 : index
    %18 = vector.load %arg1[%c0_42, %c6_43, %c0_44] : memref<1x16x256xf32, #tpu.memory_space<vmem>>, vector<1x1x256xf32>
    %c0_45 = arith.constant 0 : index
    %c9_46 = arith.constant 9 : index
    %c0_47 = arith.constant 0 : index
    %19 = vector.load %arg2[%c0_45, %c9_46, %c0_47] : memref<1x16x256xf32, #tpu.memory_space<vmem>>, vector<1x1x256xf32>
    tpu.vector_store %arg2[%c0_45, %c9_46, %c0_47], %18 {strides = array<i32>} : memref<1x16x256xf32, #tpu.memory_space<vmem>>, vector<1x1x256xf32>,
    %c0_48 = arith.constant 0 : index
    %c10 = arith.constant 10 : index
    %c0_49 = arith.constant 0 : index
    %20 = vector.load %arg1[%c0_48, %c10, %c0_49] : memref<1x16x256xf32, #tpu.memory_space<vmem>>, vector<1x1x256xf32>
    %c0_50 = arith.constant 0 : index
    %c10_51 = arith.constant 10 : index
    %c0_52 = arith.constant 0 : index
    %21 = vector.load %arg2[%c0_50, %c10_51, %c0_52] : memref<1x16x256xf32, #tpu.memory_space<vmem>>, vector<1x1x256xf32>
    tpu.vector_store %arg2[%c0_50, %c10_51, %c0_52], %20 {strides = array<i32>} : memref<1x16x256xf32, #tpu.memory_space<vmem>>, vector<1x1x256xf32>,
    %c0_53 = arith.constant 0 : index
    %c14 = arith.constant 14 : index
    %c0_54 = arith.constant 0 : index
    %22 = vector.load %arg1[%c0_53, %c14, %c0_54] : memref<1x16x256xf32, #tpu.memory_space<vmem>>, vector<1x1x256xf32>
    %c0_55 = arith.constant 0 : index
    %c11 = arith.constant 11 : index
    %c0_56 = arith.constant 0 : index
    %23 = vector.load %arg2[%c0_55, %c11, %c0_56] : memref<1x16x256xf32, #tpu.memory_space<vmem>>, vector<1x1x256xf32>
    tpu.vector_store %arg2[%c0_55, %c11, %c0_56], %22 {strides = array<i32>} : memref<1x16x256xf32, #tpu.memory_space<vmem>>, vector<1x1x256xf32>,
    %c0_57 = arith.constant 0 : index
    %c3_58 = arith.constant 3 : index
    %c0_59 = arith.constant 0 : index
    %24 = vector.load %arg1[%c0_57, %c3_58, %c0_59] : memref<1x16x256xf32, #tpu.memory_space<vmem>>, vector<1x1x256xf32>
    %c0_60 = arith.constant 0 : index
    %c12_61 = arith.constant 12 : index
    %c0_62 = arith.constant 0 : index
    %25 = vector.load %arg2[%c0_60, %c12_61, %c0_62] : memref<1x16x256xf32, #tpu.memory_space<vmem>>, vector<1x1x256xf32>
    tpu.vector_store %arg2[%c0_60, %c12_61, %c0_62], %24 {strides = array<i32>} : memref<1x16x256xf32, #tpu.memory_space<vmem>>, vector<1x1x256xf32>,
    %c0_63 = arith.constant 0 : index
    %c7_64 = arith.constant 7 : index
    %c0_65 = arith.constant 0 : index
    %26 = vector.load %arg1[%c0_63, %c7_64, %c0_65] : memref<1x16x256xf32, #tpu.memory_space<vmem>>, vector<1x1x256xf32>
    %c0_66 = arith.constant 0 : index
    %c13_67 = arith.constant 13 : index
    %c0_68 = arith.constant 0 : index
    %27 = vector.load %arg2[%c0_66, %c13_67, %c0_68] : memref<1x16x256xf32, #tpu.memory_space<vmem>>, vector<1x1x256xf32>
    tpu.vector_store %arg2[%c0_66, %c13_67, %c0_68], %26 {strides = array<i32>} : memref<1x16x256xf32, #tpu.memory_space<vmem>>, vector<1x1x256xf32>,
    %c0_69 = arith.constant 0 : index
    %c11_70 = arith.constant 11 : index
    %c0_71 = arith.constant 0 : index
    %28 = vector.load %arg1[%c0_69, %c11_70, %c0_71] : memref<1x16x256xf32, #tpu.memory_space<vmem>>, vector<1x1x256xf32>
    %c0_72 = arith.constant 0 : index
    %c14_73 = arith.constant 14 : index
    %c0_74 = arith.constant 0 : index
    %29 = vector.load %arg2[%c0_72, %c14_73, %c0_74] : memref<1x16x256xf32, #tpu.memory_space<vmem>>, vector<1x1x256xf32>
    tpu.vector_store %arg2[%c0_72, %c14_73, %c0_74], %28 {strides = array<i32>} : memref<1x16x256xf32, #tpu.memory_space<vmem>>, vector<1x1x256xf32>,
    %c0_75 = arith.constant 0 : index
    %c15 = arith.constant 15 : index
    %c0_76 = arith.constant 0 : index
    %30 = vector.load %arg1[%c0_75, %c15, %c0_76] : memref<1x16x256xf32, #tpu.memory_space<vmem>>, vector<1x1x256xf32>
    %c0_77 = arith.constant 0 : index
    %c15_78 = arith.constant 15 : index
    %c0_79 = arith.constant 0 : index
    %31 = vector.load %arg2[%c0_77, %c15_78, %c0_79] : memref<1x16x256xf32, #tpu.memory_space<vmem>>, vector<1x1x256xf32>
    tpu.vector_store %arg2[%c0_77, %c15_78, %c0_79], %30 {strides = array<i32>} : memref<1x16x256xf32, #tpu.memory_space<vmem>>, vector<1x1x256xf32>,
    return
  }
  func.func @transform_0(%arg0: i32) -> (i32, i32, i32) {
    %c0_i32 = arith.constant 0 : i32
    %c0_i32_0 = arith.constant 0 : i32
    %c0_i32_1 = arith.constant 0 : i32
    return %arg0, %c0_i32, %c0_i32_0 : i32, i32, i32
  }
  func.func @transform_1(%arg0: i32) -> (i32, i32, i32) {
    %c0_i32 = arith.constant 0 : i32
    %c0_i32_0 = arith.constant 0 : i32
    %c0_i32_1 = arith.constant 0 : i32
    return %arg0, %c0_i32, %c0_i32_0 : i32, i32, i32
  }
}

</mosaic_0001>

<llo_original>
// kernel: tpu_custom_call.1
$region0: #{tpu_custom_call.1}
  #allocation0 [shape = 'u32[]', space=smem, size = 0x4, offset = 0x4, fixed_abs, tag = 'smem constant byte address 0x4 - core index']
  #allocation1 [shape = 'u32[144,128]{1,0:T(1,128)}', space=vmem, size = 0x12000, scoped, tag = 'internal scratch']
  %s0 = inlined_call_operand.hbm [shape: f32[2,16,256], index: 0, kind: input, shape index: {}]
  %s1 = inlined_call_operand.hbm [shape: f32[2,16,256], index: 1, kind: output, shape index: {}]
  %s2 = sld [smem:[#allocation0]]
  $region41: #{tpu_custom_call.1} parent=0
    _
  %s4 = ssub.s32 1, %s2
  %s5 = scalar_select 0, %s4, %s2
  $region1: #{tpu_custom_call.1} parent=0
    #allocation2 [shape = 'u8[32768]{0}', space=vmem, size = 0x8000, scoped, tag = 'input window, operand 0']
    #allocation3 [shape = 's32[2]{0}', space=sflag, size = 0x8, scoped, tag = 'scoped memory for tpu_custom_call.1']
    #allocation4 [shape = 's32[2]{0}', space=sflag, size = 0x8, scoped, tag = 'scoped memory for tpu_custom_call.1']
    #allocation5 [shape = 'u8[32768]{0}', space=vmem, size = 0x8000, scoped, tag = 'output window, operand 0']
    %6 = vsyncpa [#allocation3], 0
    %s7 = scalar_lea.sflag [#allocation3], 1
    %8 = vsyncpa %s7, 0
    %9 = vsyncpa [#allocation4], 0
    %s10 = scalar_lea.sflag [#allocation4], 1
    %11 = vsyncpa %s10, 0
    loop: start=0, step=1, limit=4
    $region2: #{tpu_custom_call.1} parent=1 // loop_pre_header
      _
    $region3: #{tpu_custom_call.1} parent=1 // loop_header
      %s13 = sphi 0, %s17
      %p14 = scmp.ge.s32.totalorder %s13, 4
      %s23 = sphi 0, %s25
      %s26 = sphi 0, %s23
      %s27 = sphi 0, %s26
      %s43 = sphi 0, %s27
      %s49 = sphi 0, %s51
      %s52 = sphi 0, %s49
      %s53 = sphi 0, %s52
      %s69 = sphi 0, %s53
    $region4: #{tpu_custom_call.1} parent=1 // loop_header_branch
      %16 = sbr.rel (%p14) target = $region8
    $region5: #{tpu_custom_call.1} parent=1 // loop_body
      %s18 = ssub.s32 %s13, 1
      %s19 = ssub.s32 %s13, 2
      %s20 = sadd.s32 %s13, 1
      %s21 = ssub.s32 %s13, %s20
      %p22 = scmp.eq.s32.totalorder %s21, 0
      %s24 = sadd.s32 %s23, 1
      %s25 = scalar_select %p22, %s23, %s24
      %p28 = pneg %p22
      %p29 = scmp.eq.s32.totalorder %s13, 1
      %p30 = por %p28, %p29
      %p31 = scmp.ne.s32.totalorder %s23, %s26
      %p32 = scmp.eq.s32.totalorder %s13, 0
      %p33 = por %p31, %p32
      %p34 = scmp.ne.s32.totalorder %s23, %s26
      %p35 = scmp.eq.s32.totalorder %s18, 1
      %p36 = por %p34, %p35
      %p37 = scmp.ne.s32.totalorder %s26, %s27
      %p38 = scmp.eq.s32.totalorder %s18, 0
      %p39 = por %p37, %p38
      %p40 = scmp.ne.s32.totalorder %s26, %s27
      %p41 = scmp.eq.s32.totalorder %s19, 1
      %p42 = por %p40, %p41
      %p44 = scmp.ne.s32.totalorder %s27, %s43
      %p45 = scmp.eq.s32.totalorder %s19, 0
      %p46 = por %p44, %p45
      %s47 = ssub.s32 %s13, %s20
      %p48 = scmp.eq.s32.totalorder %s47, 0
      %s50 = sadd.s32 %s49, 1
      %s51 = scalar_select %p48, %s49, %s50
      %p54 = pneg %p48
      %p55 = scmp.eq.s32.totalorder %s13, 1
      %p56 = por %p54, %p55
      %p57 = scmp.ne.s32.totalorder %s49, %s52
      %p58 = scmp.eq.s32.totalorder %s13, 0
      %p59 = por %p57, %p58
      %p60 = scmp.ne.s32.totalorder %s49, %s52
      %p61 = scmp.eq.s32.totalorder %s18, 1
      %p62 = por %p60, %p61
      %p63 = scmp.ne.s32.totalorder %s52, %s53
      %p64 = scmp.eq.s32.totalorder %s18, 0
      %p65 = por %p63, %p64
      %p66 = scmp.ne.s32.totalorder %s52, %s53
      %p67 = scmp.eq.s32.totalorder %s19, 1
      %p68 = por %p66, %p67
      %p70 = scmp.ne.s32.totalorder %s53, %s69
      %p71 = scmp.eq.s32.totalorder %s19, 0
      %p72 = por %p70, %p71
      %p73 = scmp.le.s32.totalorder 1, %s13
      %p74 = scmp.lt.s32.totalorder %s13, 3
      %p75 = pnand %p73, %p74
      %p76 = pneg %p75
      // Predicated region
      $region9: #{tpu_custom_call.1} parent=5 // pred_check
        _
      $region10: #{tpu_custom_call.1} parent=5 // pred_check_branch
        %78 = sbr.rel (%p75) target = $region12
      $region11: #{tpu_custom_call.1} parent=5 // pred_region
        %s79 = ssub.s32 %s13, 1
      $region12: #{tpu_custom_call.1} parent=5 // pred_fallthru
        _
      %p80 = scmp.lt.s32.totalorder %s13, 2
      // Predicated region
      $region13: #{tpu_custom_call.1} parent=5 // pred_check
        %p81 = pneg %p80
      $region14: #{tpu_custom_call.1} parent=5 // pred_check_branch
        %83 = sbr.rel (%p81) target = $region16
      $region15: #{tpu_custom_call.1} parent=5 // pred_region
        // Predicated region
        $region17: #{tpu_custom_call.1} parent=15 // pred_check
          %p84 = pneg %p33
        $region18: #{tpu_custom_call.1} parent=15 // pred_check_branch
          %86 = sbr.rel (%p84) target = $region20
        $region19: #{tpu_custom_call.1} parent=15 // pred_region
          %s87 = sand.u32 %s23, 1
          %s88 = scalar_lea.sflag [#allocation3], %s87
          %s89 = sand.u32 %s23, 1
          %s90 = smul.addr %s89, 32
          %s91 = scalar_lea.vmem [#allocation2], %s90
          %s93 = ssub.s32 512, 512
          %94 = vsyncadd %s88, %s93
          %s95 = smul.addr %s13, 4
          %s96 = smul.addr %s95, 128
          %s97 = scalar_lea.hbm %s0, %s96
          %s98 = sshll.u32 %s91, 4
          %s99 = int_to_ptr.vmem [resolvable:$true] %s98
          %104 = dma.hbm_to_vmem [thread:$0]  %s97, 512, %s99, %s88, 256, 256, 16
        $region20: #{tpu_custom_call.1} parent=15 // pred_fallthru
          _
      $region16: #{tpu_custom_call.1} parent=5 // pred_fallthru
        _
      %p105 = scmp.le.s32.totalorder 1, %s13
      %p106 = scmp.lt.s32.totalorder %s13, 3
      %p107 = pnand %p105, %p106
      %p108 = pneg %p107
      // Predicated region
      $region21: #{tpu_custom_call.1} parent=5 // pred_check
        _
      $region22: #{tpu_custom_call.1} parent=5 // pred_check_branch
        %110 = sbr.rel (%p107) target = $region24
      $region23: #{tpu_custom_call.1} parent=5 // pred_region
        %s111 = ssub.s32 %s13, 1
        %s112 = sand.u32 %s26, 1
        %s113 = scalar_lea.sflag [#allocation3], %s112
        %s114 = sand.u32 %s26, 1
        %s115 = smul.addr %s114, 32
        %s116 = scalar_lea.vmem [#allocation2], %s115
        // Predicated region
        $region25: #{tpu_custom_call.1} parent=23 // pred_check
          %p117 = pneg %p39
        $region26: #{tpu_custom_call.1} parent=23 // pred_check_branch
          %119 = sbr.rel (%p117) target = $region28
        $region27: #{tpu_custom_call.1} parent=23 // pred_region
          %120 = dma.done %s113, 512
        $region28: #{tpu_custom_call.1} parent=23 // pred_fallthru
          _
        %s121 = sand.u32 %s26, 1
        %s122 = scalar_lea.sflag [#allocation3], %s121
        %s123 = sand.u32 %s26, 1
        %s124 = smul.addr %s123, 32
        %s125 = scalar_lea.vmem [#allocation2], %s124
        %p126 = pneg %p39
        %p127 = pneg %p36
        %p128 = pneg %p65
        %p129 = pneg %p62
        %s130 = sand.u32 %s52, 1
        %s131 = scalar_lea.sflag [#allocation4], %s130
        %s132 = sand.u32 %s52, 1
        %s133 = smul.addr %s132, 32
        %s134 = scalar_lea.vmem [#allocation5], %s133
        %v135 = vld [vmem:[%s116] ss:$8 sm:$0x3]
        %v136 = vlaneseq
        %vm137 = vcmp.ge.s32.totalorder %v136, 0
        %vm138 = vcmp.lt.s32.totalorder %v136, 256
        %vm139 = vmand %vm137, %vm138
        %140 = vst.msk [vmem:[%s134] ss:$8 sm:$0x3] %vm139, %v135
        %141 = vst.msk [vmem:[%s134] ss:$8 sm:$0x0] %vm139, %v135
        %s142 = scalar_lea.vmem %s116, 4 [#allocation2]
        %v143 = vld [vmem:[%s142] ss:$8 sm:$0x3]
        %s144 = scalar_lea.vmem %s134, 1 [#allocation5]
        %145 = vst.msk [vmem:[%s144] ss:$8 sm:$0x3] %vm139, %v143
        %146 = vst.msk [vmem:[%s144] ss:$8 sm:$0x0] %vm139, %v143
        %s147 = scalar_lea.vmem %s116, 16 [#allocation2]
        %v148 = vld [vmem:[%s147] ss:$8 sm:$0x3]
        %s149 = scalar_lea.vmem %s134, 2 [#allocation5]
        %150 = vst.msk [vmem:[%s149] ss:$8 sm:$0x3] %vm139, %v148
        %151 = vst.msk [vmem:[%s149] ss:$8 sm:$0x0] %vm139, %v148
        %s152 = scalar_lea.vmem %s116, 20 [#allocation2]
        %v153 = vld [vmem:[%s152] ss:$8 sm:$0x3]
        %s154 = scalar_lea.vmem %s134, 3 [#allocation5]
        %155 = vst.msk [vmem:[%s154] ss:$8 sm:$0x3] %vm139, %v153
        %156 = vst.msk [vmem:[%s154] ss:$8 sm:$0x0] %vm139, %v153
        %s157 = scalar_lea.vmem %s116, 1 [#allocation2]
        %v158 = vld [vmem:[%s157] ss:$8 sm:$0x3]
        %s159 = scalar_lea.vmem %s134, 4 [#allocation5]
        %160 = vst.msk [vmem:[%s159] ss:$8 sm:$0x3] %vm139, %v158
        %161 = vst.msk [vmem:[%s159] ss:$8 sm:$0x0] %vm139, %v158
        %s162 = scalar_lea.vmem %s116, 5 [#allocation2]
        %v163 = vld [vmem:[%s162] ss:$8 sm:$0x3]
        %s164 = scalar_lea.vmem %s134, 5 [#allocation5]
        %165 = vst.msk [vmem:[%s164] ss:$8 sm:$0x3] %vm139, %v163
        %166 = vst.msk [vmem:[%s164] ss:$8 sm:$0x0] %vm139, %v163
        %s167 = scalar_lea.vmem %s116, 17 [#allocation2]
        %v168 = vld [vmem:[%s167] ss:$8 sm:$0x3]
        %s169 = scalar_lea.vmem %s134, 6 [#allocation5]
        %170 = vst.msk [vmem:[%s169] ss:$8 sm:$0x3] %vm139, %v168
        %171 = vst.msk [vmem:[%s169] ss:$8 sm:$0x0] %vm139, %v168
        %s172 = scalar_lea.vmem %s116, 21 [#allocation2]
        %v173 = vld [vmem:[%s172] ss:$8 sm:$0x3]
        %s174 = scalar_lea.vmem %s134, 7 [#allocation5]
        %175 = vst.msk [vmem:[%s174] ss:$8 sm:$0x3] %vm139, %v173
        %176 = vst.msk [vmem:[%s174] ss:$8 sm:$0x0] %vm139, %v173
        %s177 = scalar_lea.vmem %s116, 2 [#allocation2]
        %v178 = vld [vmem:[%s177] ss:$8 sm:$0x3]
        %s179 = scalar_lea.vmem %s134, 16 [#allocation5]
        %180 = vst.msk [vmem:[%s179] ss:$8 sm:$0x3] %vm139, %v178
        %181 = vst.msk [vmem:[%s179] ss:$8 sm:$0x0] %vm139, %v178
        %s182 = scalar_lea.vmem %s116, 6 [#allocation2]
        %v183 = vld [vmem:[%s182] ss:$8 sm:$0x3]
        %s184 = scalar_lea.vmem %s134, 17 [#allocation5]
        %185 = vst.msk [vmem:[%s184] ss:$8 sm:$0x3] %vm139, %v183
        %186 = vst.msk [vmem:[%s184] ss:$8 sm:$0x0] %vm139, %v183
        %s187 = scalar_lea.vmem %s116, 18 [#allocation2]
        %v188 = vld [vmem:[%s187] ss:$8 sm:$0x3]
        %s189 = scalar_lea.vmem %s134, 18 [#allocation5]
        %190 = vst.msk [vmem:[%s189] ss:$8 sm:$0x3] %vm139, %v188
        %191 = vst.msk [vmem:[%s189] ss:$8 sm:$0x0] %vm139, %v188
        %s192 = scalar_lea.vmem %s116, 22 [#allocation2]
        %v193 = vld [vmem:[%s192] ss:$8 sm:$0x3]
        %s194 = scalar_lea.vmem %s134, 19 [#allocation5]
        %195 = vst.msk [vmem:[%s194] ss:$8 sm:$0x3] %vm139, %v193
        %196 = vst.msk [vmem:[%s194] ss:$8 sm:$0x0] %vm139, %v193
        %s197 = scalar_lea.vmem %s116, 3 [#allocation2]
        %v198 = vld [vmem:[%s197] ss:$8 sm:$0x3]
        %s199 = scalar_lea.vmem %s134, 20 [#allocation5]
        %200 = vst.msk [vmem:[%s199] ss:$8 sm:$0x3] %vm139, %v198
        %201 = vst.msk [vmem:[%s199] ss:$8 sm:$0x0] %vm139, %v198
        %s202 = scalar_lea.vmem %s116, 7 [#allocation2]
        %v203 = vld [vmem:[%s202] ss:$8 sm:$0x3]
        %s204 = scalar_lea.vmem %s134, 21 [#allocation5]
        %205 = vst.msk [vmem:[%s204] ss:$8 sm:$0x3] %vm139, %v203
        %206 = vst.msk [vmem:[%s204] ss:$8 sm:$0x0] %vm139, %v203
        %s207 = scalar_lea.vmem %s116, 19 [#allocation2]
        %v208 = vld [vmem:[%s207] ss:$8 sm:$0x3]
        %s209 = scalar_lea.vmem %s134, 22 [#allocation5]
        %210 = vst.msk [vmem:[%s209] ss:$8 sm:$0x3] %vm139, %v208
        %211 = vst.msk [vmem:[%s209] ss:$8 sm:$0x0] %vm139, %v208
        %s212 = scalar_lea.vmem %s116, 23 [#allocation2]
        %v213 = vld [vmem:[%s212] ss:$8 sm:$0x3]
        %s214 = scalar_lea.vmem %s134, 23 [#allocation5]
        %215 = vst.msk [vmem:[%s214] ss:$8 sm:$0x3] %vm139, %v213
        %216 = vst.msk [vmem:[%s214] ss:$8 sm:$0x0] %vm139, %v213
        %s217 = sand.u32 %s52, 1
        %s218 = scalar_lea.sflag [#allocation4], %s217
        %s219 = sand.u32 %s52, 1
        %s220 = smul.addr %s219, 32
        %s221 = scalar_lea.vmem [#allocation5], %s220
        // Predicated region
        $region29: #{tpu_custom_call.1} parent=23 // pred_check
          %p222 = pneg %p62
        $region30: #{tpu_custom_call.1} parent=23 // pred_check_branch
          %224 = sbr.rel (%p222) target = $region32
        $region31: #{tpu_custom_call.1} parent=23 // pred_region
          %s226 = ssub.s32 512, 512
          %227 = vsyncadd %s218, %s226
          %s228 = smul.addr %s18, 4
          %s229 = smul.addr %s228, 128
          %s230 = scalar_lea.hbm %s1, %s229
          %s231 = sshll.u32 %s221, 4
          %s232 = int_to_ptr.vmem [resolvable:$true] %s231
          %237 = dma.vmem_to_hbm [thread:$0]  %s232, 512, %s230, %s218, 256, 256, 16
        $region32: #{tpu_custom_call.1} parent=23 // pred_fallthru
          _
      $region24: #{tpu_custom_call.1} parent=5 // pred_fallthru
        _
      %p238 = scmp.le.s32.totalorder 2, %s13
      // Predicated region
      $region33: #{tpu_custom_call.1} parent=5 // pred_check
        %p239 = pneg %p238
      $region34: #{tpu_custom_call.1} parent=5 // pred_check_branch
        %241 = sbr.rel (%p239) target = $region36
      $region35: #{tpu_custom_call.1} parent=5 // pred_region
        %s242 = ssub.s32 %s13, 2
        // Predicated region
        $region37: #{tpu_custom_call.1} parent=35 // pred_check
          %p243 = pneg %p68
        $region38: #{tpu_custom_call.1} parent=35 // pred_check_branch
          %245 = sbr.rel (%p243) target = $region40
        $region39: #{tpu_custom_call.1} parent=35 // pred_region
          %s246 = sand.u32 %s53, 1
          %s247 = scalar_lea.sflag [#allocation4], %s246
          %s248 = sand.u32 %s53, 1
          %s249 = smul.addr %s248, 32
          %s250 = scalar_lea.vmem [#allocation5], %s249
          %251 = dma.done %s247, 512
        $region40: #{tpu_custom_call.1} parent=35 // pred_fallthru
          _
      $region36: #{tpu_custom_call.1} parent=5 // pred_fallthru
        _
    $region6: #{tpu_custom_call.1} parent=1 // loop_footer
      %s17 = sadd.s32 1, %s13
    $region7: #{tpu_custom_call.1} parent=1 // loop_footer_branch
      %12 = sbr.rel target = $region3
    $region8: #{tpu_custom_call.1} parent=1 // loop_exit
      _
    %252 = vsyncpa [#allocation3], 1
    %s253 = scalar_lea.sflag [#allocation3], 1
    %254 = vsyncpa %s253, 1
    %255 = vsyncpa [#allocation4], 1
    %s256 = scalar_lea.sflag [#allocation4], 1
    %257 = vsyncpa %s256, 1

</llo_original>
